<compile_context>
chip_gen: v7x
topology: tpu7x:2x2x1
jax: 0.10.0
libtpu: 0.0.40
codegen_flags: <defaults>
</compile_context>

<pallas_src>
import functools

import jax
import jax.numpy as jnp
from jax.experimental import pallas as pl
from jax.experimental.pallas import tpu as pltpu


def _round_up(x, m):
    return (x + m - 1) // m * m


# --------------------------- kernels ---------------------------

def _gcn_layer1_kernel(a_ref, g_ref, b1_ref, w2p_ref, o_ref, acc_ref,
                       *, bk, resident):
    """Row block i of  g1 = relu(A_hat @ (X W1) + b1) @ (W2 Wp)."""
    k = pl.program_id(1)

    @pl.when(k == 0)
    def _():
        acc_ref[...] = jnp.zeros_like(acc_ref)

    if resident:
        g = g_ref[pl.ds(pl.multiple_of(k * bk, bk), bk), :]
    else:
        g = g_ref[...]
    acc_ref[...] += jnp.dot(a_ref[...], g, preferred_element_type=jnp.float32)

    @pl.when(k == pl.num_programs(1) - 1)
    def _():
        h1 = jnp.maximum(acc_ref[...] + b1_ref[...], 0.0)          # f32 bias + relu
        g1 = jnp.dot(h1.astype(w2p_ref.dtype), w2p_ref[...],
                     preferred_element_type=jnp.float32)
        o_ref[...] = g1.astype(o_ref.dtype)


def _gcn_layer2_kernel(a_ref, g_ref, b2p_ref, o_ref, acc_ref, *, bk, resident):
    """Row block i of  out = A_hat @ g1 + (b2 Wp + bp)."""
    k = pl.program_id(1)

    @pl.when(k == 0)
    def _():
        acc_ref[...] = jnp.zeros_like(acc_ref)

    if resident:
        g = g_ref[pl.ds(pl.multiple_of(k * bk, bk), bk), :]
    else:
        g = g_ref[...]
    acc_ref[...] += jnp.dot(a_ref[...], g, preferred_element_type=jnp.float32)

    @pl.when(k == pl.num_programs(1) - 1)
    def _():
        o_ref[...] = (acc_ref[...] + b2p_ref[...]).astype(o_ref.dtype)


# --------------------------- wrapper ---------------------------

def gcl_forward(a_hat, x, w1, b1, w2, b2, wp, bp, *,
                block_m=None, block_k=None, compute_dtype=jnp.bfloat16,
                force_streaming=False):
    """Fused GCL forward.  a_hat: (N, N) normalized adjacency, x: (N, in_dim)."""
    n = x.shape[0]
    hid_dim = w1.shape[1]
    out_dim = wp.shape[1]
    f32 = jnp.float32
    itemsize = jnp.dtype(compute_dtype).itemsize

    # Lane-dense feature widths (multiples of 128) -> unmasked vector stores.
    hid_p = _round_up(hid_dim, 128)
    out_p = _round_up(out_dim, 128)

    # ---- tile sizes ---------------------------------------------------------
    n_128 = _round_up(n, 128)
    bm = block_m if block_m is not None else 512
    bk = block_k if block_k is not None else 2048
    assert bm % 128 == 0 and bk % 128 == 0, "block sizes must be multiples of 128"
    # Keep >= 2 row blocks when the graph allows it (v7x megacore: 2 TensorCores
    # share the "parallel" row axis).
    half_rows = max(128, (n_128 // 2) // 128 * 128)
    bm = min(bm, n_128, half_rows)
    bk = min(bk, n_128)

    # ---- generation-aware VMEM budget ---------------------------------------
    try:
        vmem_cap = int(getattr(pltpu.get_tpu_info(), "vmem_capacity_bytes",
                               64 * 1024 * 1024))
    except Exception:
        vmem_cap = 64 * 1024 * 1024   # conservative (v7x per-core VMEM)
    budget = min(int(0.70 * vmem_cap), 100 * 1024 * 1024)

    def _vmem_est(bm_, bk_, cols_p_, g_width, acc_width, resident, w_elems):
        return (2 * bm_ * bk_ * itemsize                               # A tile (dbl buf)
                + 2 * (cols_p_ if resident else bk_) * g_width * itemsize  # XW1 / g1
                + 2 * bm_ * out_p * itemsize                           # output tile
                + bm_ * acc_width * 4                                  # f32 accumulator
                + 2 * w_elems * itemsize                               # resident weights
                + 2 * (hid_p + out_p) * 4)                             # biases

    # Shrink bk if even streaming mode would blow the budget (huge user tiles).
    while bk > 128:
        cols_p_try = _round_up(n, bk)
        worst = max(
            _vmem_est(bm, bk, cols_p_try, hid_p, hid_p, False, hid_p * out_p),
            _vmem_est(bm, bk, cols_p_try, out_p, out_p, False, 0))
        if worst <= budget:
            break
        bk //= 2

    # Independent row/column padding (rows -> bm, cols -> bk).
    n_rows_p = _round_up(n, bm)
    n_cols_p = _round_up(n, bk)
    grid = (n_rows_p // bm, n_cols_p // bk)

    resident1 = (not force_streaming) and (
        _vmem_est(bm, bk, n_cols_p, hid_p, hid_p, True, hid_p * out_p) <= budget)
    resident2 = (not force_streaming) and (
        _vmem_est(bm, bk, n_cols_p, out_p, out_p, True, 0) <= budget)

    # ---- operand preparation (f32 math, then cast to compute dtype) ---------
    xw1 = x.astype(f32) @ w1.astype(f32)                       # pre-multiplied features
    w2p = w2.astype(f32) @ wp.astype(f32)                      # folded projection weight
    b2p = b2.astype(f32) @ wp.astype(f32) + bp.astype(f32)     # folded projection bias

    def _pad2(arr, rows, cols, dtype):
        arr = jnp.pad(arr, ((0, rows - arr.shape[0]), (0, cols - arr.shape[1])))
        return arr.astype(dtype)

    a_p = _pad2(a_hat.astype(f32), n_rows_p, n_cols_p, compute_dtype)
    xw1_p = _pad2(xw1, n_cols_p, hid_p, compute_dtype)
    w2p_p = _pad2(w2p, hid_p, out_p, compute_dtype)
    b1_p = _pad2(b1.reshape(1, -1).astype(f32), 1, hid_p, f32)
    b2p_p = _pad2(b2p.reshape(1, -1), 1, out_p, f32)

    def g_spec(width, resident):
        if resident:
            return pl.BlockSpec((n_cols_p, width), lambda i, k: (0, 0))
        return pl.BlockSpec((bk, width), lambda i, k: (k, 0))

    cparams = pltpu.CompilerParams(
        dimension_semantics=("parallel", "arbitrary"),   # megacore rows, sequential K
        vmem_limit_bytes=budget,
    )

    xw1_reads = 1 if resident1 else grid[0]
    g1_reads = 1 if resident2 else grid[0]
    cost1 = pl.CostEstimate(
        flops=2 * n_rows_p * n_cols_p * hid_p + 2 * n_rows_p * hid_p * out_p,
        transcendentals=0,
        bytes_accessed=(n_rows_p * n_cols_p * itemsize
                        + xw1_reads * n_cols_p * hid_p * itemsize
                        + hid_p * out_p * itemsize + hid_p * 4
                        + n_rows_p * out_p * itemsize),
    )
    cost2 = pl.CostEstimate(
        flops=2 * n_rows_p * n_cols_p * out_p,
        transcendentals=0,
        bytes_accessed=(n_rows_p * n_cols_p * itemsize
                        + g1_reads * n_cols_p * out_p * itemsize
                        + out_p * 4
                        + n_rows_p * out_p * itemsize),
    )

    # Layer 1 (+ hoisted W2p matmul): g1 = relu((A_hat @ XW1) + b1) @ W2p.
    g1 = pl.pallas_call(
        functools.partial(_gcn_layer1_kernel, bk=bk, resident=resident1),
        out_shape=jax.ShapeDtypeStruct((n_rows_p, out_p), compute_dtype),
        grid_spec=pltpu.PrefetchScalarGridSpec(
            num_scalar_prefetch=0,
            grid=grid,
            in_specs=[
                pl.BlockSpec((bm, bk), lambda i, k: (i, k)),        # A_hat tile
                g_spec(hid_p, resident1),                           # XW1 (resident/stream)
                pl.BlockSpec((1, hid_p), lambda i, k: (0, 0)),      # b1
                pl.BlockSpec((hid_p, out_p), lambda i, k: (0, 0)),  # W2p (resident)
            ],
            out_specs=pl.BlockSpec((bm, out_p), lambda i, k: (i, 0)),
            scratch_shapes=[pltpu.VMEM((bm, hid_p), jnp.float32)],
        ),
        compiler_params=cparams,
        cost_estimate=cost1,
    )(a_p, xw1_p, b1_p, w2p_p)

    # Re-pad the intermediate to A_hat's column padding (pad values irrelevant:
    # the matching A_hat columns are zero).
    if n_rows_p < n_cols_p:
        g1 = jnp.pad(g1, ((0, n_cols_p - n_rows_p), (0, 0)))
    elif n_rows_p > n_cols_p:
        g1 = g1[:n_cols_p]

    # Layer 2 + folded projection head: out = A_hat @ g1 + b2p.
    out = pl.pallas_call(
        functools.partial(_gcn_layer2_kernel, bk=bk, resident=resident2),
        out_shape=jax.ShapeDtypeStruct((n_rows_p, out_p), compute_dtype),
        grid_spec=pltpu.PrefetchScalarGridSpec(
            num_scalar_prefetch=0,
            grid=grid,
            in_specs=[
                pl.BlockSpec((bm, bk), lambda i, k: (i, k)),        # A_hat tile
                g_spec(out_p, resident2),                           # g1 (resident/stream)
                pl.BlockSpec((1, out_p), lambda i, k: (0, 0)),      # b2p
            ],
            out_specs=pl.BlockSpec((bm, out_p), lambda i, k: (i, 0)),
            scratch_shapes=[pltpu.VMEM((bm, out_p), jnp.float32)],
        ),
        compiler_params=cparams,
        cost_estimate=cost2,
    )(a_p, g1, b2p_p)

    return out[:n, :out_dim].astype(jnp.float32)


def build_norm_adj(edge_index, edge_weight, num_nodes):
    """Dense GCN-normalized adjacency (PyG GCNConv semantics, add_self_loops=True)."""
    src, dst = edge_index[0], edge_index[1]
    if edge_weight is None:
        edge_weight = jnp.ones(src.shape[0], dtype=jnp.float32)
    a = jnp.zeros((num_nodes, num_nodes), jnp.float32).at[dst, src].add(edge_weight)
    a = a + jnp.eye(num_nodes, dtype=jnp.float32)
    deg = a.sum(axis=1)
    dinv = jnp.where(deg > 0, 1.0 / jnp.sqrt(deg), 0.0)
    return dinv[:, None] * a * dinv[None, :]


if __name__ == "__main__":
    key = jax.random.PRNGKey(0)

    def make_problem(k, n, in_dim, hid_dim, out_dim):
        ks = jax.random.split(k, 8)
        x = jax.random.normal(ks[0], (n, in_dim), dtype=jnp.float32)
        # Deterministic edge list: ring graph in both directions.
        src = jnp.concatenate([jnp.arange(n), (jnp.arange(n) + 1) % n]).astype(jnp.int32)
        dst = jnp.concatenate([(jnp.arange(n) + 1) % n, jnp.arange(n)]).astype(jnp.int32)
        edge_index = jnp.stack([src, dst], axis=0)
        edge_weight = jax.random.uniform(ks[7], (edge_index.shape[1],),
                                         dtype=jnp.float32, minval=0.5, maxval=1.5)

        def init_w(kk, fi, fo):
            return (jax.random.normal(kk, (fi, fo), dtype=jnp.float32)
                    / jnp.sqrt(jnp.float32(fi)))

        w1 = init_w(ks[1], in_dim, hid_dim)
        b1 = 0.01 * jax.random.normal(ks[2], (hid_dim,), dtype=jnp.float32)
        w2 = init_w(ks[3], hid_dim, out_dim)
        b2 = 0.01 * jax.random.normal(ks[4], (out_dim,), dtype=jnp.float32)
        wp = init_w(ks[5], out_dim, out_dim)
        bp = 0.01 * jax.random.normal(ks[6], (out_dim,), dtype=jnp.float32)
        a_hat = build_norm_adj(edge_index, edge_weight, n)
        return a_hat, x, (w1, b1, w2, b2, wp, bp)

    def reference(a_hat, x, params):
        w1, b1, w2, b2, wp, bp = params
        h = jnp.maximum(a_hat @ (x @ w1) + b1[None, :], 0.0)
        h = a_hat @ (h @ w2) + b2[None, :]
        return h @ wp + bp[None, :]

    k_small, k_big = jax.random.split(key)

    # 1) Tiny graph: f32 compute path (tight check) + bf16 perf path (loose check).
    a_hat, x, params = make_problem(k_small, 8, 16, 32, 16)
    ref = reference(a_hat, x, params)

    out_f32 = gcl_forward(a_hat, x, *params, compute_dtype=jnp.float32)
    jax.block_until_ready(out_f32)
    assert out_f32.shape == ref.shape
    assert jnp.allclose(out_f32, ref, atol=1e-4, rtol=1e-4), \
        float(jnp.max(jnp.abs(out_f32 - ref)))

    out_bf16 = gcl_forward(a_hat, x, *params, compute_dtype=jnp.bfloat16)
    jax.block_until_ready(out_bf16)
    assert out_bf16.shape == ref.shape
    assert jnp.allclose(out_bf16, ref, atol=1e-1, rtol=1e-1), \
        float(jnp.max(jnp.abs(out_bf16 - ref)))

    # 2) Multi-block graph: exercises K reduction, asymmetric row/col padding
    #    (rows->bm, cols->bk), and both the resident and streaming operand paths.
    a_hat2, x2, params2 = make_problem(k_big, 300, 20, 48, 24)
    ref2 = reference(a_hat2, x2, params2)
    for streaming in (False, True):
        out2 = gcl_forward(a_hat2, x2, *params2, compute_dtype=jnp.float32,
                           block_m=128, block_k=256, force_streaming=streaming)
        jax.block_until_ready(out2)
        assert out2.shape == ref2.shape
        assert jnp.allclose(out2, ref2, atol=1e-3, rtol=1e-3), \
            float(jnp.max(jnp.abs(out2 - ref2)))

    print("KERNEL_OK")
</pallas_src>

<mosaic_0001>
module attributes {stable_mosaic.version = 11 : i64} {
  func.func @_gcn_layer1_kernel(%arg0: i32, %arg1: i32, %arg2: memref<128x128xf32, #tpu.memory_space<vmem>>, %arg3: memref<128x128xf32, #tpu.memory_space<vmem>>, %arg4: memref<1x128xf32, #tpu.memory_space<vmem>>, %arg5: memref<128x128xf32, #tpu.memory_space<vmem>>, %arg6: memref<128x128xf32, #tpu.memory_space<vmem>>, %arg7: memref<128x128xf32, #tpu.memory_space<vmem>>) attributes {dimension_semantics = [#tpu.dimension_semantics<parallel>, #tpu.dimension_semantics<arbitrary>], iteration_bounds = array<i64: 1, 1>, scalar_prefetch = 0 : i64, scratch_operands = 1 : i64, tpu.core_type = #tpu.core_type<tc>, window_params = [{transform_indices = @transform_0, window_bounds = array<i64: 128, 128>}, {pipeline_mode = #tpu.pipeline_mode<synchronous>, transform_indices = @transform_1, window_bounds = array<i64: 128, 128>}, {pipeline_mode = #tpu.pipeline_mode<synchronous>, transform_indices = @transform_2, window_bounds = array<i64: 1, 128>}, {pipeline_mode = #tpu.pipeline_mode<synchronous>, transform_indices = @transform_3, window_bounds = array<i64: 128, 128>}, {transform_indices = @transform_4, window_bounds = array<i64: 128, 128>}]} {
    %c0_i32 = arith.constant 0 : i32
    %0 = arith.cmpi eq, %arg1, %c0_i32 : i32
    %1 = arith.extui %0 : i1 to i32
    %c0_i32_0 = arith.constant 0 : i32
    %2 = arith.cmpi ne, %1, %c0_i32_0 : i32
    scf.if %2 {
      %cst_9 = arith.constant 0.000000e+00 : f32
      %15 = vector.broadcast %cst_9 : f32 to vector<128x128xf32>
      %c0_10 = arith.constant 0 : index
      %c0_11 = arith.constant 0 : index
      %16 = vector.load %arg7[%c0_10, %c0_11] : memref<128x128xf32, #tpu.memory_space<vmem>>, vector<128x128xf32>
      tpu.vector_store %arg7[%c0_10, %c0_11], %15 {strides = array<i32>} : memref<128x128xf32, #tpu.memory_space<vmem>>, vector<128x128xf32>,
    } else {
    }
    %c128_i32 = arith.constant 128 : i32
    %3 = arith.muli %arg1, %c128_i32 : i32
    %4 = tpu.assume_multiple %3, 128 : i32
    %5 = arith.index_cast %4 : i32 to index
    %c0 = arith.constant 0 : index
    %6 = vector.load %arg3[%5, %c0] : memref<128x128xf32, #tpu.memory_space<vmem>>, vector<128x128xf32>
    %c0_1 = arith.constant 0 : index
    %c0_2 = arith.constant 0 : index
    %7 = vector.load %arg7[%c0_1, %c0_2] : memref<128x128xf32, #tpu.memory_space<vmem>>, vector<128x128xf32>
    %c0_3 = arith.constant 0 : index
    %c0_4 = arith.constant 0 : index
    %8 = vector.load %arg2[%c0_3, %c0_4] : memref<128x128xf32, #tpu.memory_space<vmem>>, vector<128x128xf32>
    %cst = arith.constant dense<0.000000e+00> : vector<128x128xf32>
    %9 = tpu.matmul %8, %6, %cst {dimension_numbers = #tpu.dot_dimension_numbers<[1], [0], [0], [1], [0, 0, 1, 1], [], []>} : vector<128x128xf32>, vector<128x128xf32>, vector<128x128xf32> -> vector<128x128xf32>
    %10 = arith.addf %7, %9 : vector<128x128xf32>
    %c0_5 = arith.constant 0 : index
    %c0_6 = arith.constant 0 : index
    %11 = vector.load %arg7[%c0_5, %c0_6] : memref<128x128xf32, #tpu.memory_space<vmem>>, vector<128x128xf32>
    tpu.vector_store %arg7[%c0_5, %c0_6], %10 {strides = array<i32>} : memref<128x128xf32, #tpu.memory_space<vmem>>, vector<128x128xf32>,
    %c0_i32_7 = arith.constant 0 : i32
    %12 = arith.cmpi eq, %arg1, %c0_i32_7 : i32
    %13 = arith.extui %12 : i1 to i32
    %c0_i32_8 = arith.constant 0 : i32
    %14 = arith.cmpi ne, %13, %c0_i32_8 : i32
    scf.if %14 {
      %c0_9 = arith.constant 0 : index
      %c0_10 = arith.constant 0 : index
      %15 = vector.load %arg7[%c0_9, %c0_10] : memref<128x128xf32, #tpu.memory_space<vmem>>, vector<128x128xf32>
      %c0_11 = arith.constant 0 : index
      %c0_12 = arith.constant 0 : index
      %16 = vector.load %arg4[%c0_11, %c0_12] : memref<1x128xf32, #tpu.memory_space<vmem>>, vector<1x128xf32>
      %17 = vector.broadcast %16 : vector<1x128xf32> to vector<128x128xf32>
      %18 = arith.addf %15, %17 : vector<128x128xf32>
      %cst_13 = arith.constant 0.000000e+00 : f32
      %19 = vector.broadcast %cst_13 : f32 to vector<128x128xf32>
      %20 = arith.maximumf %18, %19 : vector<128x128xf32>
      %c0_14 = arith.constant 0 : index
      %c0_15 = arith.constant 0 : index
      %21 = vector.load %arg5[%c0_14, %c0_15] : memref<128x128xf32, #tpu.memory_space<vmem>>, vector<128x128xf32>
      %cst_16 = arith.constant dense<0.000000e+00> : vector<128x128xf32>
      %22 = tpu.matmul %20, %21, %cst_16 {dimension_numbers = #tpu.dot_dimension_numbers<[1], [0], [0], [1], [0, 0, 1, 1], [], []>} : vector<128x128xf32>, vector<128x128xf32>, vector<128x128xf32> -> vector<128x128xf32>
      %c0_17 = arith.constant 0 : index
      %c0_18 = arith.constant 0 : index
      %23 = vector.load %arg6[%c0_17, %c0_18] : memref<128x128xf32, #tpu.memory_space<vmem>>, vector<128x128xf32>
      tpu.vector_store %arg6[%c0_17, %c0_18], %22 {strides = array<i32>} : memref<128x128xf32, #tpu.memory_space<vmem>>, vector<128x128xf32>,
    } else {
    }
    return
  }
  func.func @transform_0(%arg0: i32, %arg1: i32) -> (i32, i32) {
    %c0_i32 = arith.constant 0 : i32
    return %arg0, %arg1 : i32, i32
  }
  func.func @transform_1(%arg0: i32, %arg1: i32) -> (i32, i32) {
    %c0_i32 = arith.constant 0 : i32
    %c0_i32_0 = arith.constant 0 : i32
    %c0_i32_1 = arith.constant 0 : i32
    return %c0_i32, %c0_i32_0 : i32, i32
  }
  func.func @transform_2(%arg0: i32, %arg1: i32) -> (i32, i32) {
    %c0_i32 = arith.constant 0 : i32
    %c0_i32_0 = arith.constant 0 : i32
    %c0_i32_1 = arith.constant 0 : i32
    return %c0_i32, %c0_i32_0 : i32, i32
  }
  func.func @transform_3(%arg0: i32, %arg1: i32) -> (i32, i32) {
    %c0_i32 = arith.constant 0 : i32
    %c0_i32_0 = arith.constant 0 : i32
    %c0_i32_1 = arith.constant 0 : i32
    return %c0_i32, %c0_i32_0 : i32, i32
  }
  func.func @transform_4(%arg0: i32, %arg1: i32) -> (i32, i32) {
    %c0_i32 = arith.constant 0 : i32
    %c0_i32_0 = arith.constant 0 : i32
    return %arg0, %c0_i32 : i32, i32
  }
}

</mosaic_0001>

<llo_original>
// kernel: tpu_custom_call.1
$region0: #{tpu_custom_call.1}
  #allocation0 [shape = 'u32[]', space=smem, size = 0x4, offset = 0x4, fixed_abs, tag = 'smem constant byte address 0x4 - core index']
  #allocation1 [shape = 'u32[144,128]{1,0:T(1,128)}', space=vmem, size = 0x12000, scoped, tag = 'internal scratch']
  #allocation2 [shape = 'f32[128,128]{1,0:T(8,128)}', space=vmem, size = 0x10000, scoped, tag = 'scratch operand']
  %s0 = inlined_call_operand.hbm [shape: f32[128,128], index: 0, kind: input, shape index: {}]
  %s1 = inlined_call_operand.hbm [shape: f32[128,128], index: 1, kind: input, shape index: {}]
  %s2 = inlined_call_operand.vmem [shape: f32[1,128], index: 2, kind: input, shape index: {}]
  %s3 = inlined_call_operand.hbm [shape: f32[128,128], index: 3, kind: input, shape index: {}]
  %s4 = inlined_call_operand.hbm [shape: f32[128,128], index: 4, kind: output, shape index: {}]
  %s5 = sld [smem:[#allocation0]]
  $region46: #{tpu_custom_call.1} parent=0
    _
  %s7 = ssub.s32 1, %s5
  %s8 = scalar_select 0, %s7, %s5
  $region1: #{tpu_custom_call.1} parent=0
    #allocation3 [shape = 'u8[65536]{0}', space=vmem, size = 0x10000, scoped, tag = 'input window, operand 0, single buffered']
    #allocation4 [shape = 's32[1]{0}', space=sflag, size = 0x4, scoped, tag = 'scoped memory for tpu_custom_call.1']
    #allocation5 [shape = 's32[1]{0}', space=sflag, size = 0x4, scoped, tag = 'scoped memory for tpu_custom_call.1']
    #allocation6 [shape = 'u8[65536]{0}', space=vmem, size = 0x10000, scoped, tag = 'input window, operand 1, single buffered']
    #allocation7 [shape = 's32[1]{0}', space=sflag, size = 0x4, scoped, tag = 'scoped memory for tpu_custom_call.1']
    #allocation8 [shape = 'u8[65536]{0}', space=vmem, size = 0x10000, scoped, tag = 'input window, operand 3, single buffered']
    #allocation9 [shape = 'u8[65536]{0}', space=vmem, size = 0x10000, scoped, tag = 'output window, operand 0, single buffered']
    %9 = vsyncpa [#allocation4], 0
    %10 = vsyncpa [#allocation7], 0
    %11 = vsyncpa [#allocation5], 0
    // Predicated region
    $region2: #{tpu_custom_call.1} parent=1 // pred_check
      _
    $region3: #{tpu_custom_call.1} parent=1 // pred_check_branch
      %13 = sbr.rel (0) target = $region5
    $region4: #{tpu_custom_call.1} parent=1 // pred_region
      %s15 = ssub.s32 2048, 2048
      %16 = vsyncadd [#allocation4], %s15
      %s17 = sshll.u32 [#allocation3], 4
      %s18 = int_to_ptr.vmem [resolvable:$true] %s17
      %23 = dma.hbm_to_vmem [thread:$0]  %s0, 2048, %s18, [#allocation4], 128, 128, 8
    $region5: #{tpu_custom_call.1} parent=1 // pred_fallthru
      _
    // Predicated region
    $region6: #{tpu_custom_call.1} parent=1 // pred_check
      _
    $region7: #{tpu_custom_call.1} parent=1 // pred_check_branch
      %25 = sbr.rel (0) target = $region9
    $region8: #{tpu_custom_call.1} parent=1 // pred_region
      %s27 = ssub.s32 2048, 2048
      %28 = vsyncadd [#allocation7], %s27
      %s29 = sshll.u32 [#allocation6], 4
      %s30 = int_to_ptr.vmem [resolvable:$true] %s29
      %35 = dma.hbm_to_vmem [thread:$0]  %s1, 2048, %s30, [#allocation7], 128, 128, 8
    $region9: #{tpu_custom_call.1} parent=1 // pred_fallthru
      _
    // Predicated region
    $region10: #{tpu_custom_call.1} parent=1 // pred_check
      _
    $region11: #{tpu_custom_call.1} parent=1 // pred_check_branch
      %37 = sbr.rel (0) target = $region13
    $region12: #{tpu_custom_call.1} parent=1 // pred_region
      _
    $region13: #{tpu_custom_call.1} parent=1 // pred_fallthru
      _
    // Predicated region
    $region14: #{tpu_custom_call.1} parent=1 // pred_check
      _
    $region15: #{tpu_custom_call.1} parent=1 // pred_check_branch
      %39 = sbr.rel (0) target = $region17
    $region16: #{tpu_custom_call.1} parent=1 // pred_region
      %s41 = ssub.s32 2048, 2048
      %42 = vsyncadd [#allocation7], %s41
      %s43 = sshll.u32 [#allocation8], 4
      %s44 = int_to_ptr.vmem [resolvable:$true] %s43
      %49 = dma.hbm_to_vmem [thread:$0]  %s3, 2048, %s44, [#allocation7], 128, 128, 8
    $region17: #{tpu_custom_call.1} parent=1 // pred_fallthru
      _
    // Predicated region
    $region18: #{tpu_custom_call.1} parent=1 // pred_check
      _
    $region19: #{tpu_custom_call.1} parent=1 // pred_check_branch
      %51 = sbr.rel (0) target = $region21
    $region20: #{tpu_custom_call.1} parent=1 // pred_region
      %52 = dma.done [#allocation4], 2048
    $region21: #{tpu_custom_call.1} parent=1 // pred_fallthru
      _
    // Predicated region
    $region22: #{tpu_custom_call.1} parent=1 // pred_check
      _
    $region23: #{tpu_custom_call.1} parent=1 // pred_check_branch
      %54 = sbr.rel (0) target = $region25
    $region24: #{tpu_custom_call.1} parent=1 // pred_region
      %55 = dma.done [#allocation7], 2048
    $region25: #{tpu_custom_call.1} parent=1 // pred_fallthru
      _
    // Predicated region
    $region26: #{tpu_custom_call.1} parent=1 // pred_check
      _
    $region27: #{tpu_custom_call.1} parent=1 // pred_check_branch
      %57 = sbr.rel (0) target = $region29
    $region28: #{tpu_custom_call.1} parent=1 // pred_region
      %58 = dma.done [#allocation7], 2048
    $region29: #{tpu_custom_call.1} parent=1 // pred_fallthru
      _
    %p59 = scmp.eq.s32.totalorder 0, 0
    // Predicated region
    $region30: #{tpu_custom_call.1} parent=1 // pred_check
      %p60 = pneg %p59
    $region31: #{tpu_custom_call.1} parent=1 // pred_check_branch
      %62 = sbr.rel (%p60) target = $region33
    $region32: #{tpu_custom_call.1} parent=1 // pred_region
      %63 = vst [vmem:[#allocation2] sm:$0xff] 0.0
      %64 = vst [vmem:[#allocation2 + $0x8] sm:$0xff] 0.0
      %65 = vst [vmem:[#allocation2 + $0x10] sm:$0xff] 0.0
      %66 = vst [vmem:[#allocation2 + $0x18] sm:$0xff] 0.0
      %67 = vst [vmem:[#allocation2 + $0x20] sm:$0xff] 0.0
      %68 = vst [vmem:[#allocation2 + $0x28] sm:$0xff] 0.0
      %69 = vst [vmem:[#allocation2 + $0x30] sm:$0xff] 0.0
      %70 = vst [vmem:[#allocation2 + $0x38] sm:$0xff] 0.0
      %71 = vst [vmem:[#allocation2 + $0x40] sm:$0xff] 0.0
      %72 = vst [vmem:[#allocation2 + $0x48] sm:$0xff] 0.0
      %73 = vst [vmem:[#allocation2 + $0x50] sm:$0xff] 0.0
      %74 = vst [vmem:[#allocation2 + $0x58] sm:$0xff] 0.0
      %75 = vst [vmem:[#allocation2 + $0x60] sm:$0xff] 0.0
      %76 = vst [vmem:[#allocation2 + $0x68] sm:$0xff] 0.0
      %77 = vst [vmem:[#allocation2 + $0x70] sm:$0xff] 0.0
      %78 = vst [vmem:[#allocation2 + $0x78] sm:$0xff] 0.0
    $region33: #{tpu_custom_call.1} parent=1 // pred_fallthru
      _
    %s79 = smul.u32 0, 128
    %s80 = scalar_lea.vmem [#allocation6], %s79
    %v81 = vld [vmem:[%s80] sm:$0xff]
    %v82 = vld [vmem:[%s80 + $0x8] sm:$0xff]
    %v83 = vld [vmem:[%s80 + $0x10] sm:$0xff]
    %v84 = vld [vmem:[%s80 + $0x18] sm:$0xff]
    %v85 = vld [vmem:[%s80 + $0x20] sm:$0xff]
    %v86 = vld [vmem:[%s80 + $0x28] sm:$0xff]
    %v87 = vld [vmem:[%s80 + $0x30] sm:$0xff]
    %v88 = vld [vmem:[%s80 + $0x38] sm:$0xff]
    %v89 = vld [vmem:[%s80 + $0x40] sm:$0xff]
    %v90 = vld [vmem:[%s80 + $0x48] sm:$0xff]
    %v91 = vld [vmem:[%s80 + $0x50] sm:$0xff]
    %v92 = vld [vmem:[%s80 + $0x58] sm:$0xff]
    %v93 = vld [vmem:[%s80 + $0x60] sm:$0xff]
    %v94 = vld [vmem:[%s80 + $0x68] sm:$0xff]
    %v95 = vld [vmem:[%s80 + $0x70] sm:$0xff]
    %v96 = vld [vmem:[%s80 + $0x78] sm:$0xff]
    %v97 = vld [vmem:[#allocation2] sm:$0xff]
    %v98 = vld [vmem:[#allocation2 + $0x8] sm:$0xff]
    %v99 = vld [vmem:[#allocation2 + $0x10] sm:$0xff]
    %v100 = vld [vmem:[#allocation2 + $0x18] sm:$0xff]
    %v101 = vld [vmem:[#allocation2 + $0x20] sm:$0xff]
    %v102 = vld [vmem:[#allocation2 + $0x28] sm:$0xff]
    %v103 = vld [vmem:[#allocation2 + $0x30] sm:$0xff]
    %v104 = vld [vmem:[#allocation2 + $0x38] sm:$0xff]
    %v105 = vld [vmem:[#allocation2 + $0x40] sm:$0xff]
    %v106 = vld [vmem:[#allocation2 + $0x48] sm:$0xff]
    %v107 = vld [vmem:[#allocation2 + $0x50] sm:$0xff]
    %v108 = vld [vmem:[#allocation2 + $0x58] sm:$0xff]
    %v109 = vld [vmem:[#allocation2 + $0x60] sm:$0xff]
    %v110 = vld [vmem:[#allocation2 + $0x68] sm:$0xff]
    %v111 = vld [vmem:[#allocation2 + $0x70] sm:$0xff]
    %v112 = vld [vmem:[#allocation2 + $0x78] sm:$0xff]
    %v113 = vld [vmem:[#allocation3] sm:$0xff]
    %v114 = vld [vmem:[#allocation3 + $0x8] sm:$0xff]
    %v115 = vld [vmem:[#allocation3 + $0x10] sm:$0xff]
    %v116 = vld [vmem:[#allocation3 + $0x18] sm:$0xff]
    %v117 = vld [vmem:[#allocation3 + $0x20] sm:$0xff]
    %v118 = vld [vmem:[#allocation3 + $0x28] sm:$0xff]
    %v119 = vld [vmem:[#allocation3 + $0x30] sm:$0xff]
    %v120 = vld [vmem:[#allocation3 + $0x38] sm:$0xff]
    %v121 = vld [vmem:[#allocation3 + $0x40] sm:$0xff]
    %v122 = vld [vmem:[#allocation3 + $0x48] sm:$0xff]
    %v123 = vld [vmem:[#allocation3 + $0x50] sm:$0xff]
    %v124 = vld [vmem:[#allocation3 + $0x58] sm:$0xff]
    %v125 = vld [vmem:[#allocation3 + $0x60] sm:$0xff]
    %v126 = vld [vmem:[#allocation3 + $0x68] sm:$0xff]
    %v127 = vld [vmem:[#allocation3 + $0x70] sm:$0xff]
    %v128 = vld [vmem:[#allocation3 + $0x78] sm:$0xff]
    %129 = vmatprep.subr.mxu0 0.0
    %130 = vmatpush1.msra.mxu0 %v81
    %131 = vmatprep.subr.mxu0 0.0
    %132 = vmatpush1.msra.mxu0 %v82
    %133 = vmatprep.subr.mxu0 0.0
    %134 = vmatpush1.msra.mxu0 %v83
    %135 = vmatprep.subr.mxu0 0.0
    %136 = vmatpush1.msra.mxu0 %v84
    %137 = vmatprep.subr.mxu0 0.0
    %138 = vmatpush1.msra.mxu0 %v85
    %139 = vmatprep.subr.mxu0 0.0
    %140 = vmatpush1.msra.mxu0 %v86
    %141 = vmatprep.subr.mxu0 0.0
    %142 = vmatpush1.msra.mxu0 %v87
    %143 = vmatprep.subr.mxu0 0.0
    %144 = vmatpush1.msra.mxu0 %v88
    %145 = vmatprep.subr.mxu0 0.0
    %146 = vmatpush1.msra.mxu0 %v89
    %147 = vmatprep.subr.mxu0 0.0
    %148 = vmatpush1.msra.mxu0 %v90
    %149 = vmatprep.subr.mxu0 0.0
    %150 = vmatpush1.msra.mxu0 %v91
    %151 = vmatprep.subr.mxu0 0.0
    %152 = vmatpush1.msra.mxu0 %v92
    %153 = vmatprep.subr.mxu0 0.0
    %154 = vmatpush1.msra.mxu0 %v93
    %155 = vmatprep.subr.mxu0 0.0
    %156 = vmatpush1.msra.mxu0 %v94
    %157 = vmatprep.subr.mxu0 0.0
    %158 = vmatpush1.msra.mxu0 %v95
    %159 = vmatprep.subr.mxu0 0.0
    %160 = vmatpush1.msra.mxu0 %v96
    %161 = vmatprep.subr.mxu0 0.0
    %162 = vmatpush1.msra.mxu0 0.0
    %163 = vmatprep.subr.mxu0 0.0
    %164 = vmatpush1.msra.mxu0 0.0
    %165 = vmatprep.subr.mxu0 0.0
    %166 = vmatpush1.msra.mxu0 0.0
    %167 = vmatprep.subr.mxu0 0.0
    %168 = vmatpush1.msra.mxu0 0.0
    %169 = vmatprep.subr.mxu0 0.0
    %170 = vmatpush1.msra.mxu0 0.0
    %171 = vmatprep.subr.mxu0 0.0
    %172 = vmatpush1.msra.mxu0 0.0
    %173 = vmatprep.subr.mxu0 0.0
    %174 = vmatpush1.msra.mxu0 0.0
    %175 = vmatprep.subr.mxu0 0.0
    %176 = vmatpush1.msra.mxu0 0.0
    %177 = vmatprep.subr.mxu0 0.0
    %178 = vmatpush1.msra.mxu0 0.0
    %179 = vmatprep.subr.mxu0 0.0
    %180 = vmatpush1.msra.mxu0 0.0
    %181 = vmatprep.subr.mxu0 0.0
    %182 = vmatpush1.msra.mxu0 0.0
    %183 = vmatprep.subr.mxu0 0.0
    %184 = vmatpush1.msra.mxu0 0.0
    %185 = vmatprep.subr.mxu0 0.0
    %186 = vmatpush1.msra.mxu0 0.0
    %187 = vmatprep.subr.mxu0 0.0
    %188 = vmatpush1.msra.mxu0 0.0
    %189 = vmatprep.subr.mxu0 0.0
    %190 = vmatpush1.msra.mxu0 0.0
    %191 = vmatprep.subr.mxu0 0.0
    %192 = vmatpush1.msra.mxu0 0.0
    %193 = vmatprep.mubr.f32.mxu0 0.0
    %194 = vmatmul.mubr.f32.gmra.mrb[0].mxu0 %v113
    %v195 = vpop.f32.mrb[0].mxu0
    %v196 = vadd.f32 0.0, %v195
    %v197 = vpop.f32.mrb[0].mxu0
    %198 = vmatprep.mubr.f32.mxu0 0.0
    %199 = vmatmul.mubr.f32.gmra.mrb[0].mxu0 %v114
    %v200 = vpop.f32.mrb[0].mxu0
    %v201 = vadd.f32 0.0, %v200
    %v202 = vpop.f32.mrb[0].mxu0
    %203 = vmatprep.mubr.f32.mxu0 0.0
    %204 = vmatmul.mubr.f32.gmra.mrb[0].mxu0 %v115
    %v205 = vpop.f32.mrb[0].mxu0
    %v206 = vadd.f32 0.0, %v205
    %v207 = vpop.f32.mrb[0].mxu0
    %208 = vmatprep.mubr.f32.mxu0 0.0
    %209 = vmatmul.mubr.f32.gmra.mrb[0].mxu0 %v116
    %v210 = vpop.f32.mrb[0].mxu0
    %v211 = vadd.f32 0.0, %v210
    %v212 = vpop.f32.mrb[0].mxu0
    %213 = vmatprep.mubr.f32.mxu0 0.0
    %214 = vmatmul.mubr.f32.gmra.mrb[0].mxu0 %v117
    %v215 = vpop.f32.mrb[0].mxu0
    %v216 = vadd.f32 0.0, %v215
    %v217 = vpop.f32.mrb[0].mxu0
    %218 = vmatprep.mubr.f32.mxu0 0.0
    %219 = vmatmul.mubr.f32.gmra.mrb[0].mxu0 %v118
    %v220 = vpop.f32.mrb[0].mxu0
    %v221 = vadd.f32 0.0, %v220
    %v222 = vpop.f32.mrb[0].mxu0
    %223 = vmatprep.mubr.f32.mxu0 0.0
    %224 = vmatmul.mubr.f32.gmra.mrb[0].mxu0 %v119
    %v225 = vpop.f32.mrb[0].mxu0
    %v226 = vadd.f32 0.0, %v225
    %v227 = vpop.f32.mrb[0].mxu0
    %228 = vmatprep.mubr.f32.mxu0 0.0
    %229 = vmatmul.mubr.f32.gmra.mrb[0].mxu0 %v120
    %v230 = vpop.f32.mrb[0].mxu0
    %v231 = vadd.f32 0.0, %v230
    %v232 = vpop.f32.mrb[0].mxu0
    %233 = vmatprep.mubr.f32.mxu0 0.0
    %234 = vmatmul.mubr.f32.gmra.mrb[0].mxu0 %v121
    %v235 = vpop.f32.mrb[0].mxu0
    %v236 = vadd.f32 0.0, %v235
    %v237 = vpop.f32.mrb[0].mxu0
    %238 = vmatprep.mubr.f32.mxu0 0.0
    %239 = vmatmul.mubr.f32.gmra.mrb[0].mxu0 %v122
    %v240 = vpop.f32.mrb[0].mxu0
    %v241 = vadd.f32 0.0, %v240
    %v242 = vpop.f32.mrb[0].mxu0
    %243 = vmatprep.mubr.f32.mxu0 0.0
    %244 = vmatmul.mubr.f32.gmra.mrb[0].mxu0 %v123
    %v245 = vpop.f32.mrb[0].mxu0
    %v246 = vadd.f32 0.0, %v245
    %v247 = vpop.f32.mrb[0].mxu0
    %248 = vmatprep.mubr.f32.mxu0 0.0
    %249 = vmatmul.mubr.f32.gmra.mrb[0].mxu0 %v124
    %v250 = vpop.f32.mrb[0].mxu0
    %v251 = vadd.f32 0.0, %v250
    %v252 = vpop.f32.mrb[0].mxu0
    %253 = vmatprep.mubr.f32.mxu0 0.0
    %254 = vmatmul.mubr.f32.gmra.mrb[0].mxu0 %v125
    %v255 = vpop.f32.mrb[0].mxu0
    %v256 = vadd.f32 0.0, %v255
    %v257 = vpop.f32.mrb[0].mxu0
    %258 = vmatprep.mubr.f32.mxu0 0.0
    %259 = vmatmul.mubr.f32.gmra.mrb[0].mxu0 %v126
    %v260 = vpop.f32.mrb[0].mxu0
    %v261 = vadd.f32 0.0, %v260
    %v262 = vpop.f32.mrb[0].mxu0
    %263 = vmatprep.mubr.f32.mxu0 0.0
    %264 = vmatmul.mubr.f32.gmra.mrb[0].mxu0 %v127
    %v265 = vpop.f32.mrb[0].mxu0
    %v266 = vadd.f32 0.0, %v265
    %v267 = vpop.f32.mrb[0].mxu0
    %268 = vmatprep.mubr.f32.mxu0 0.0
    %269 = vmatmul.mubr.f32.gmra.mrb[0].mxu0 %v128
    %v270 = vpop.f32.mrb[0].mxu0
    %v271 = vadd.f32 0.0, %v270
    %v272 = vpop.f32.mrb[0].mxu0
    %273 = vdwg.mxu0
    %v274 = vadd.f32 %v97, %v196
    %v275 = vadd.f32 %v98, %v201
    %v276 = vadd.f32 %v99, %v206
    %v277 = vadd.f32 %v100, %v211
    %v278 = vadd.f32 %v101, %v216
    %v279 = vadd.f32 %v102, %v221
    %v280 = vadd.f32 %v103, %v226
    %v281 = vadd.f32 %v104, %v231
    %v282 = vadd.f32 %v105, %v236
    %v283 = vadd.f32 %v106, %v241
    %v284 = vadd.f32 %v107, %v246
    %v285 = vadd.f32 %v108, %v251
    %v286 = vadd.f32 %v109, %v256
    %v287 = vadd.f32 %v110, %v261
    %v288 = vadd.f32 %v111, %v266
    %v289 = vadd.f32 %v112, %v271
    %290 = vst [vmem:[#allocation2] sm:$0xff] %v274
    %291 = vst [vmem:[#allocation2 + $0x8] sm:$0xff] %v275
    %292 = vst [vmem:[#allocation2 + $0x10] sm:$0xff] %v276
    %293 = vst [vmem:[#allocation2 + $0x18] sm:$0xff] %v277
    %294 = vst [vmem:[#allocation2 + $0x20] sm:$0xff] %v278
    %295 = vst [vmem:[#allocation2 + $0x28] sm:$0xff] %v279
    %296 = vst [vmem:[#allocation2 + $0x30] sm:$0xff] %v280
    %297 = vst [vmem:[#allocation2 + $0x38] sm:$0xff] %v281
    %298 = vst [vmem:[#allocation2 + $0x40] sm:$0xff] %v282
    %299 = vst [vmem:[#allocation2 + $0x48] sm:$0xff] %v283
    %300 = vst [vmem:[#allocation2 + $0x50] sm:$0xff] %v284
    %301 = vst [vmem:[#allocation2 + $0x58] sm:$0xff] %v285
    %302 = vst [vmem:[#allocation2 + $0x60] sm:$0xff] %v286
    %303 = vst [vmem:[#allocation2 + $0x68] sm:$0xff] %v287
    %304 = vst [vmem:[#allocation2 + $0x70] sm:$0xff] %v288
    %305 = vst [vmem:[#allocation2 + $0x78] sm:$0xff] %v289
    // Predicated region
    $region34: #{tpu_custom_call.1} parent=1 // pred_check
      %p306 = pneg %p59
    $region35: #{tpu_custom_call.1} parent=1 // pred_check_branch
      %308 = sbr.rel (%p306) target = $region37
    $region36: #{tpu_custom_call.1} parent=1 // pred_region
      %v309 = vld [vmem:[#allocation2] sm:$0xff]
      %v310 = vld [vmem:[#allocation2 + $0x8] sm:$0xff]
      %v311 = vld [vmem:[#allocation2 + $0x10] sm:$0xff]
      %v312 = vld [vmem:[#allocation2 + $0x18] sm:$0xff]
      %v313 = vld [vmem:[#allocation2 + $0x20] sm:$0xff]
      %v314 = vld [vmem:[#allocation2 + $0x28] sm:$0xff]
      %v315 = vld [vmem:[#allocation2 + $0x30] sm:$0xff]
      %v316 = vld [vmem:[#allocation2 + $0x38] sm:$0xff]
      %v317 = vld [vmem:[#allocation2 + $0x40] sm:$0xff]
      %v318 = vld [vmem:[#allocation2 + $0x48] sm:$0xff]
      %v319 = vld [vmem:[#allocation2 + $0x50] sm:$0xff]
      %v320 = vld [vmem:[#allocation2 + $0x58] sm:$0xff]
      %v321 = vld [vmem:[#allocation2 + $0x60] sm:$0xff]
      %v322 = vld [vmem:[#allocation2 + $0x68] sm:$0xff]
      %v323 = vld [vmem:[#allocation2 + $0x70] sm:$0xff]
      %v324 = vld [vmem:[#allocation2 + $0x78] sm:$0xff]
      %v325 = vld [vmem:[%s2] sm:$0x1]
      %v327 = vlaneseq
      %v328 = vshrl.u32 %v327, 7
      %v329 = vsub.s32 0, %v328
      %v330 = vrot.slane %v325, %v329
      %v332 = vadd.f32 %v309, %v330
      %v333 = vadd.f32 %v310, %v330
      %v334 = vadd.f32 %v311, %v330
      %v335 = vadd.f32 %v312, %v330
      %v336 = vadd.f32 %v313, %v330
      %v337 = vadd.f32 %v314, %v330
      %v338 = vadd.f32 %v315, %v330
      %v339 = vadd.f32 %v316, %v330
      %v340 = vadd.f32 %v317, %v330
      %v341 = vadd.f32 %v318, %v330
      %v342 = vadd.f32 %v319, %v330
      %v343 = vadd.f32 %v320, %v330
      %v344 = vadd.f32 %v321, %v330
      %v345 = vadd.f32 %v322, %v330
      %v346 = vadd.f32 %v323, %v330
      %v347 = vadd.f32 %v324, %v330
      %v348 = vmax.f32 %v332, 0.0
      %v349 = vmax.f32 %v333, 0.0
      %v350 = vmax.f32 %v334, 0.0
      %v351 = vmax.f32 %v335, 0.0
      %v352 = vmax.f32 %v336, 0.0
      %v353 = vmax.f32 %v337, 0.0
      %v354 = vmax.f32 %v338, 0.0
      %v355 = vmax.f32 %v339, 0.0
      %v356 = vmax.f32 %v340, 0.0
      %v357 = vmax.f32 %v341, 0.0
      %v358 = vmax.f32 %v342, 0.0
      %v359 = vmax.f32 %v343, 0.0
      %v360 = vmax.f32 %v344, 0.0
      %v361 = vmax.f32 %v345, 0.0
      %v362 = vmax.f32 %v346, 0.0
      %v363 = vmax.f32 %v347, 0.0
      %v364 = vld [vmem:[#allocation8] sm:$0xff]
      %v365 = vld [vmem:[#allocation8 + $0x8] sm:$0xff]
      %v366 = vld [vmem:[#allocation8 + $0x10] sm:$0xff]
      %v367 = vld [vmem:[#allocation8 + $0x18] sm:$0xff]
      %v368 = vld [vmem:[#allocation8 + $0x20] sm:$0xff]
      %v369 = vld [vmem:[#allocation8 + $0x28] sm:$0xff]
      %v370 = vld [vmem:[#allocation8 + $0x30] sm:$0xff]
      %v371 = vld [vmem:[#allocation8 + $0x38] sm:$0xff]
      %v372 = vld [vmem:[#allocation8 + $0x40] sm:$0xff]
      %v373 = vld [vmem:[#allocation8 + $0x48] sm:$0xff]
      %v374 = vld [vmem:[#allocation8 + $0x50] sm:$0xff]
      %v375 = vld [vmem:[#allocation8 + $0x58] sm:$0xff]
      %v376 = vld [vmem:[#allocation8 + $0x60] sm:$0xff]
      %v377 = vld [vmem:[#allocation8 + $0x68] sm:$0xff]
      %v378 = vld [vmem:[#allocation8 + $0x70] sm:$0xff]
      %v379 = vld [vmem:[#allocation8 + $0x78] sm:$0xff]
      %380 = vmatprep.subr.mxu0 0.0
      %381 = vmatpush1.msra.mxu0 %v364
      %382 = vmatprep.subr.mxu0 0.0
      %383 = vmatpush1.msra.mxu0 %v365
      %384 = vmatprep.subr.mxu0 0.0
      %385 = vmatpush1.msra.mxu0 %v366
      %386 = vmatprep.subr.mxu0 0.0
      %387 = vmatpush1.msra.mxu0 %v367
      %388 = vmatprep.subr.mxu0 0.0
      %389 = vmatpush1.msra.mxu0 %v368
      %390 = vmatprep.subr.mxu0 0.0
      %391 = vmatpush1.msra.mxu0 %v369
      %392 = vmatprep.subr.mxu0 0.0
      %393 = vmatpush1.msra.mxu0 %v370
      %394 = vmatprep.subr.mxu0 0.0
      %395 = vmatpush1.msra.mxu0 %v371
      %396 = vmatprep.subr.mxu0 0.0
      %397 = vmatpush1.msra.mxu0 %v372
      %398 = vmatprep.subr.mxu0 0.0
      %399 = vmatpush1.msra.mxu0 %v373
      %400 = vmatprep.subr.mxu0 0.0
      %401 = vmatpush1.msra.mxu0 %v374
      %402 = vmatprep.subr.mxu0 0.0
      %403 = vmatpush1.msra.mxu0 %v375
      %404 = vmatprep.subr.mxu0 0.0
      %405 = vmatpush1.msra.mxu0 %v376
      %406 = vmatprep.subr.mxu0 0.0
      %407 = vmatpush1.msra.mxu0 %v377
      %408 = vmatprep.subr.mxu0 0.0
      %409 = vmatpush1.msra.mxu0 %v378
      %410 = vmatprep.subr.mxu0 0.0
      %411 = vmatpush1.msra.mxu0 %v379
      %412 = vmatprep.subr.mxu0 0.0
      %413 = vmatpush1.msra.mxu0 0.0
      %414 = vmatprep.subr.mxu0 0.0
      %415 = vmatpush1.msra.mxu0 0.0
      %416 = vmatprep.subr.mxu0 0.0
      %417 = vmatpush1.msra.mxu0 0.0
      %418 = vmatprep.subr.mxu0 0.0
      %419 = vmatpush1.msra.mxu0 0.0
      %420 = vmatprep.subr.mxu0 0.0
      %421 = vmatpush1.msra.mxu0 0.0
      %422 = vmatprep.subr.mxu0 0.0
      %423 = vmatpush1.msra.mxu0 0.0
      %424 = vmatprep.subr.mxu0 0.0
      %425 = vmatpush1.msra.mxu0 0.0
      %426 = vmatprep.subr.mxu0 0.0
      %427 = vmatpush1.msra.mxu0 0.0
      %428 = vmatprep.subr.mxu0 0.0
      %429 = vmatpush1.msra.mxu0 0.0
      %430 = vmatprep.subr.mxu0 0.0
      %431 = vmatpush1.msra.mxu0 0.0
      %432 = vmatprep.subr.mxu0 0.0
      %433 = vmatpush1.msra.mxu0 0.0
      %434 = vmatprep.subr.mxu0 0.0
      %435 = vmatpush1.msra.mxu0 0.0
      %436 = vmatprep.subr.mxu0 0.0
      %437 = vmatpush1.msra.mxu0 0.0
      %438 = vmatprep.subr.mxu0 0.0
      %439 = vmatpush1.msra.mxu0 0.0
      %440 = vmatprep.subr.mxu0 0.0
      %441 = vmatpush1.msra.mxu0 0.0
      %442 = vmatprep.subr.mxu0 0.0
      %443 = vmatpush1.msra.mxu0 0.0
      %444 = vmatprep.mubr.f32.mxu0 0.0
      %445 = vmatmul.mubr.f32.gmra.mrb[0].mxu0 %v348
      %v446 = vpop.f32.mrb[0].mxu0
      %v447 = vadd.f32 0.0, %v446
      %v448 = vpop.f32.mrb[0].mxu0
      %449 = vmatprep.mubr.f32.mxu0 0.0
      %450 = vmatmul.mubr.f32.gmra.mrb[0].mxu0 %v349
      %v451 = vpop.f32.mrb[0].mxu0
      %v452 = vadd.f32 0.0, %v451
      %v453 = vpop.f32.mrb[0].mxu0
      %454 = vmatprep.mubr.f32.mxu0 0.0
      %455 = vmatmul.mubr.f32.gmra.mrb[0].mxu0 %v350
      %v456 = vpop.f32.mrb[0].mxu0
      %v457 = vadd.f32 0.0, %v456
      %v458 = vpop.f32.mrb[0].mxu0
      %459 = vmatprep.mubr.f32.mxu0 0.0
      %460 = vmatmul.mubr.f32.gmra.mrb[0].mxu0 %v351
      %v461 = vpop.f32.mrb[0].mxu0
      %v462 = vadd.f32 0.0, %v461
      %v463 = vpop.f32.mrb[0].mxu0
      %464 = vmatprep.mubr.f32.mxu0 0.0
      %465 = vmatmul.mubr.f32.gmra.mrb[0].mxu0 %v352
      %v466 = vpop.f32.mrb[0].mxu0
      %v467 = vadd.f32 0.0, %v466
      %v468 = vpop.f32.mrb[0].mxu0
      %469 = vmatprep.mubr.f32.mxu0 0.0
      %470 = vmatmul.mubr.f32.gmra.mrb[0].mxu0 %v353
      %v471 = vpop.f32.mrb[0].mxu0
      %v472 = vadd.f32 0.0, %v471
      %v473 = vpop.f32.mrb[0].mxu0
      %474 = vmatprep.mubr.f32.mxu0 0.0
      %475 = vmatmul.mubr.f32.gmra.mrb[0].mxu0 %v354
      %v476 = vpop.f32.mrb[0].mxu0
      %v477 = vadd.f32 0.0, %v476
      %v478 = vpop.f32.mrb[0].mxu0
      %479 = vmatprep.mubr.f32.mxu0 0.0
      %480 = vmatmul.mubr.f32.gmra.mrb[0].mxu0 %v355
      %v481 = vpop.f32.mrb[0].mxu0
      %v482 = vadd.f32 0.0, %v481
      %v483 = vpop.f32.mrb[0].mxu0
      %484 = vmatprep.mubr.f32.mxu0 0.0
      %485 = vmatmul.mubr.f32.gmra.mrb[0].mxu0 %v356
      %v486 = vpop.f32.mrb[0].mxu0
      %v487 = vadd.f32 0.0, %v486
      %v488 = vpop.f32.mrb[0].mxu0
      %489 = vmatprep.mubr.f32.mxu0 0.0
      %490 = vmatmul.mubr.f32.gmra.mrb[0].mxu0 %v357
      %v491 = vpop.f32.mrb[0].mxu0
      %v492 = vadd.f32 0.0, %v491
      %v493 = vpop.f32.mrb[0].mxu0
      %494 = vmatprep.mubr.f32.mxu0 0.0
      %495 = vmatmul.mubr.f32.gmra.mrb[0].mxu0 %v358
      %v496 = vpop.f32.mrb[0].mxu0
      %v497 = vadd.f32 0.0, %v496
      %v498 = vpop.f32.mrb[0].mxu0
      %499 = vmatprep.mubr.f32.mxu0 0.0
      %500 = vmatmul.mubr.f32.gmra.mrb[0].mxu0 %v359
      %v501 = vpop.f32.mrb[0].mxu0
      %v502 = vadd.f32 0.0, %v501
      %v503 = vpop.f32.mrb[0].mxu0
      %504 = vmatprep.mubr.f32.mxu0 0.0
      %505 = vmatmul.mubr.f32.gmra.mrb[0].mxu0 %v360
      %v506 = vpop.f32.mrb[0].mxu0
      %v507 = vadd.f32 0.0, %v506
      %v508 = vpop.f32.mrb[0].mxu0
      %509 = vmatprep.mubr.f32.mxu0 0.0
      %510 = vmatmul.mubr.f32.gmra.mrb[0].mxu0 %v361
      %v511 = vpop.f32.mrb[0].mxu0
      %v512 = vadd.f32 0.0, %v511
      %v513 = vpop.f32.mrb[0].mxu0
      %514 = vmatprep.mubr.f32.mxu0 0.0
      %515 = vmatmul.mubr.f32.gmra.mrb[0].mxu0 %v362
      %v516 = vpop.f32.mrb[0].mxu0
      %v517 = vadd.f32 0.0, %v516
      %v518 = vpop.f32.mrb[0].mxu0
      %519 = vmatprep.mubr.f32.mxu0 0.0
      %520 = vmatmul.mubr.f32.gmra.mrb[0].mxu0 %v363
      %v521 = vpop.f32.mrb[0].mxu0
      %v522 = vadd.f32 0.0, %v521
      %v523 = vpop.f32.mrb[0].mxu0
      %524 = vdwg.mxu0
      %525 = vst [vmem:[#allocation9] sm:$0xff] %v447
      %526 = vst [vmem:[#allocation9 + $0x8] sm:$0xff] %v452
      %527 = vst [vmem:[#allocation9 + $0x10] sm:$0xff] %v457
      %528 = vst [vmem:[#allocation9 + $0x18] sm:$0xff] %v462
      %529 = vst [vmem:[#allocation9 + $0x20] sm:$0xff] %v467
      %530 = vst [vmem:[#allocation9 + $0x28] sm:$0xff] %v472
      %531 = vst [vmem:[#allocation9 + $0x30] sm:$0xff] %v477
      %532 = vst [vmem:[#allocation9 + $0x38] sm:$0xff] %v482
      %533 = vst [vmem:[#allocation9 + $0x40] sm:$0xff] %v487
      %534 = vst [vmem:[#allocation9 + $0x48] sm:$0xff] %v492
      %535 = vst [vmem:[#allocation9 + $0x50] sm:$0xff] %v497
      %536 = vst [vmem:[#allocation9 + $0x58] sm:$0xff] %v502
      %537 = vst [vmem:[#allocation9 + $0x60] sm:$0xff] %v507
      %538 = vst [vmem:[#allocation9 + $0x68] sm:$0xff] %v512
      %539 = vst [vmem:[#allocation9 + $0x70] sm:$0xff] %v517
      %540 = vst [vmem:[#allocation9 + $0x78] sm:$0xff] %v522
    $region37: #{tpu_custom_call.1} parent=1 // pred_fallthru
      _
    // Predicated region
    $region38: #{tpu_custom_call.1} parent=1 // pred_check
      _
    $region39: #{tpu_custom_call.1} parent=1 // pred_check_branch
      %542 = sbr.rel (0) target = $region41
    $region40: #{tpu_custom_call.1} parent=1 // pred_region
      %s544 = ssub.s32 2048, 2048
      %545 = vsyncadd [#allocation5], %s544
      %s546 = sshll.u32 [#allocation9], 4
      %s547 = int_to_ptr.vmem [resolvable:$true] %s546
      %552 = dma.vmem_to_hbm [thread:$0]  %s547, 2048, %s4, [#allocation5], 128, 128, 8
    $region41: #{tpu_custom_call.1} parent=1 // pred_fallthru
      _
    // Predicated region
    $region42: #{tpu_custom_call.1} parent=1 // pred_check
      _
    $region43: #{tpu_custom_call.1} parent=1 // pred_check_branch
      %554 = sbr.rel (0) target = $region45
    $region44: #{tpu_custom_call.1} parent=1 // pred_region
      %555 = dma.done [#allocation5], 2048
    $region45: #{tpu_custom_call.1} parent=1 // pred_fallthru
      _
    %556 = vsyncpa [#allocation4], 1
    %557 = vsyncpa [#allocation7], 1
    %558 = vsyncpa [#allocation5], 1

</llo_original>
